<compile_context>
chip_gen: v5e
topology: v5e:2x2
jax: 0.10.0
libtpu: 0.0.40
codegen_flags: <defaults>
</compile_context>

<pallas_src>
import jax
import jax.numpy as jnp
from jax.experimental import pallas as pl
from jax.experimental.pallas import tpu as pltpu


def _make_kernel(d_in, d_h, n_act):
    """Kernel closure over static layer sizes (row offsets into the packed buffers)."""

    def kernel(x_ref, w_ref, b_ref, o_ref):
        # Activation cast: f32 (module semantics) -> bf16 MXU operand.
        x = x_ref[...].astype(jnp.float32).astype(jnp.bfloat16)

        # Unpack the weight slab (bf16, stored that way in HBM) and bias slab (f32).
        w1 = w_ref[0:d_in, :]                                   # (d_in, d_h)
        w2 = w_ref[d_in:d_in + d_h, :]                          # (d_h,  d_h)
        w3 = w_ref[d_in + d_h:d_in + 2 * d_h, 0:n_act]          # (d_h,  n_act)
        b1 = b_ref[0:1, :]                                      # (1, d_h)
        b2 = b_ref[1:2, :]                                      # (1, d_h)
        b3 = b_ref[2:3, 0:n_act]                                # (1, n_act)

        # dense1 + relu  (bf16 operands, f32 accumulation on the MXU)
        h1 = jnp.dot(x, w1, preferred_element_type=jnp.float32) + b1
        h1 = jnp.maximum(h1, 0.0)

        # dense2 + relu
        h2 = jnp.dot(h1.astype(jnp.bfloat16), w2,
                     preferred_element_type=jnp.float32) + b2
        h2 = jnp.maximum(h2, 0.0)

        # dense3
        logits = jnp.dot(h2.astype(jnp.bfloat16), w3,
                         preferred_element_type=jnp.float32) + b3

        # softmax over dim=0 (the batch axis), exactly as in the PyTorch module.
        m = jnp.max(logits, axis=0, keepdims=True)
        e = jnp.exp(logits - m)
        denom = jnp.sum(e, axis=0, keepdims=True)
        o_ref[...] = e * pl.reciprocal(denom, approx=True)

    return kernel


def pack_params(params):
    """One-time (init-time) conversion: bf16 weight slab + f32 bias slab.

    Returns (W_packed, B_packed, (d_in, d_h, n_act)).
      W_packed: (d_in + 2*d_h, max(d_h, n_act)) bf16  -- w1 / w2 / zero-padded w3
      B_packed: (3, max(d_h, n_act))            f32   -- b1 / b2 / zero-padded b3
    """
    w1, b1, w2, b2, w3, b3 = params
    d_in, d_h = w1.shape
    n_act = w3.shape[1]
    width = max(d_h, n_act)

    def pad_w(w):
        return jnp.pad(w, ((0, 0), (0, width - w.shape[1])))

    def pad_b(b):
        b = b.reshape(1, -1)
        return jnp.pad(b, ((0, 0), (0, width - b.shape[1])))

    W_packed = jnp.concatenate([pad_w(w1), pad_w(w2), pad_w(w3)],
                               axis=0).astype(jnp.bfloat16)
    B_packed = jnp.concatenate([pad_b(b1), pad_b(b2), pad_b(b3)],
                               axis=0).astype(jnp.float32)
    return W_packed, B_packed, (d_in, d_h, n_act)


def mlp_backward_policy(s, W_packed, B_packed, dims):
    """s: (B, state_dim, state_dim), any float/int dtype. Returns (B, num_actions) f32."""
    d_in, d_h, n_act = dims
    B = s.shape[0]
    x = s.reshape(B, -1)                     # view only; cast happens in-kernel

    vmem = pl.BlockSpec(memory_space=pltpu.MemorySpace.VMEM)

    flops = (2 * B * (d_in * d_h + d_h * d_h + d_h * n_act)   # matmuls
             + 4 * B * d_h + 3 * B * n_act)                   # bias/relu/softmax
    bytes_accessed = (x.size * x.dtype.itemsize
                      + int(W_packed.size) * W_packed.dtype.itemsize
                      + int(B_packed.size) * B_packed.dtype.itemsize
                      + B * n_act * 4)

    out = pl.pallas_call(
        _make_kernel(d_in, d_h, n_act),
        out_shape=jax.ShapeDtypeStruct((B, n_act), jnp.float32),
        grid=(),
        in_specs=[vmem, vmem, vmem],
        out_specs=vmem,
        cost_estimate=pl.CostEstimate(
            flops=flops,
            transcendentals=B * n_act,
            bytes_accessed=bytes_accessed,
        ),
    )(x, W_packed, B_packed)
    return out


def init_params(key, state_dim, hidden_dim, num_actions):
    """Deterministic init matching nn.Linear default: U(-1/sqrt(fan_in), 1/sqrt(fan_in))."""
    d_in = state_dim * state_dim
    d_h = hidden_dim * hidden_dim
    ks = jax.random.split(key, 6)

    def lin(kw, kb, fan_in, fan_out):
        bound = 1.0 / jnp.sqrt(fan_in)
        w = jax.random.uniform(kw, (fan_in, fan_out), jnp.float32, -bound, bound)
        b = jax.random.uniform(kb, (1, fan_out), jnp.float32, -bound, bound)
        return w, b

    w1, b1 = lin(ks[0], ks[1], d_in, d_h)
    w2, b2 = lin(ks[2], ks[3], d_h, d_h)
    w3, b3 = lin(ks[4], ks[5], d_h, num_actions)
    return (w1, b1, w2, b2, w3, b3)


if __name__ == "__main__":
    state_dim = 8
    hidden_dim = 8
    num_actions = 16
    batch_size = 8

    key = jax.random.PRNGKey(0)
    k_s, k_p = jax.random.split(key)
    s = jax.random.normal(k_s, (batch_size, state_dim, state_dim), jnp.float32)
    params = init_params(k_p, state_dim, hidden_dim, num_actions)
    W_packed, B_packed, dims = pack_params(params)      # one-time, off the hot path

    out = jax.block_until_ready(mlp_backward_policy(s, W_packed, B_packed, dims))

    # Pure-JAX reference with the same bf16-operand / f32-accumulate matmul
    # semantics as the kernel (bf16-stored weights == f32 weights cast to bf16).
    w1, b1, w2, b2, w3, b3 = params
    bf = jnp.bfloat16
    x = s.reshape(batch_size, -1)
    h1 = jnp.maximum(jnp.dot(x.astype(bf), w1.astype(bf),
                             preferred_element_type=jnp.float32) + b1, 0.0)
    h2 = jnp.maximum(jnp.dot(h1.astype(bf), w2.astype(bf),
                             preferred_element_type=jnp.float32) + b2, 0.0)
    logits = jnp.dot(h2.astype(bf), w3.astype(bf),
                     preferred_element_type=jnp.float32) + b3
    ref = jax.nn.softmax(logits, axis=0)

    assert out.shape == (batch_size, num_actions)
    # approx-reciprocal softmax denom => slightly looser tolerance than exact divide
    assert bool(jnp.allclose(out, ref, atol=5e-3, rtol=5e-3))
    # softmax over dim=0 => each action column sums to ~1 across the batch
    assert bool(jnp.allclose(out.sum(axis=0), 1.0, atol=5e-3))

    print("KERNEL_OK")
</pallas_src>

<mosaic_0001>
module attributes {stable_mosaic.version = 11 : i64} {
  func.func @kernel(%arg0: memref<8x64xf32, #tpu.memory_space<vmem>>, %arg1: memref<192x64xbf16, #tpu.memory_space<vmem>>, %arg2: memref<3x64xf32, #tpu.memory_space<vmem>>, %arg3: memref<8x16xf32, #tpu.memory_space<vmem>>) attributes {dimension_semantics = [], scalar_prefetch = 0 : i64, scratch_operands = 0 : i64, tpu.core_type = #tpu.core_type<tc>} {
    %c0 = arith.constant 0 : index
    %c0_0 = arith.constant 0 : index
    %0 = vector.load %arg0[%c0, %c0_0] : memref<8x64xf32, #tpu.memory_space<vmem>>, vector<8x64xf32>
    %1 = arith.truncf %0 : vector<8x64xf32> to vector<8x64xbf16>
    %c0_1 = arith.constant 0 : index
    %c0_2 = arith.constant 0 : index
    %2 = vector.load %arg1[%c0_1, %c0_2] : memref<192x64xbf16, #tpu.memory_space<vmem>>, vector<64x64xbf16>
    %c64 = arith.constant 64 : index
    %c0_3 = arith.constant 0 : index
    %3 = vector.load %arg1[%c64, %c0_3] : memref<192x64xbf16, #tpu.memory_space<vmem>>, vector<64x64xbf16>
    %c128 = arith.constant 128 : index
    %c0_4 = arith.constant 0 : index
    %4 = vector.load %arg1[%c128, %c0_4] : memref<192x64xbf16, #tpu.memory_space<vmem>>, vector<64x16xbf16>
    %c0_5 = arith.constant 0 : index
    %c0_6 = arith.constant 0 : index
    %5 = vector.load %arg2[%c0_5, %c0_6] : memref<3x64xf32, #tpu.memory_space<vmem>>, vector<1x64xf32>
    %c1 = arith.constant 1 : index
    %c0_7 = arith.constant 0 : index
    %6 = vector.load %arg2[%c1, %c0_7] : memref<3x64xf32, #tpu.memory_space<vmem>>, vector<1x64xf32>
    %c2 = arith.constant 2 : index
    %c0_8 = arith.constant 0 : index
    %7 = vector.load %arg2[%c2, %c0_8] : memref<3x64xf32, #tpu.memory_space<vmem>>, vector<1x16xf32>
    %cst = arith.constant dense<0.000000e+00> : vector<8x64xf32>
    %8 = tpu.matmul %1, %2, %cst {dimension_numbers = #tpu.dot_dimension_numbers<[1], [0], [0], [1], [0, 0, 1, 1], [], []>} : vector<8x64xbf16>, vector<64x64xbf16>, vector<8x64xf32> -> vector<8x64xf32>
    %9 = vector.broadcast %5 : vector<1x64xf32> to vector<8x64xf32>
    %10 = arith.addf %8, %9 : vector<8x64xf32>
    %cst_9 = arith.constant 0.000000e+00 : f32
    %11 = vector.broadcast %cst_9 : f32 to vector<8x64xf32>
    %12 = arith.maximumf %10, %11 : vector<8x64xf32>
    %13 = arith.truncf %12 : vector<8x64xf32> to vector<8x64xbf16>
    %cst_10 = arith.constant dense<0.000000e+00> : vector<8x64xf32>
    %14 = tpu.matmul %13, %3, %cst_10 {dimension_numbers = #tpu.dot_dimension_numbers<[1], [0], [0], [1], [0, 0, 1, 1], [], []>} : vector<8x64xbf16>, vector<64x64xbf16>, vector<8x64xf32> -> vector<8x64xf32>
    %15 = vector.broadcast %6 : vector<1x64xf32> to vector<8x64xf32>
    %16 = arith.addf %14, %15 : vector<8x64xf32>
    %cst_11 = arith.constant 0.000000e+00 : f32
    %17 = vector.broadcast %cst_11 : f32 to vector<8x64xf32>
    %18 = arith.maximumf %16, %17 : vector<8x64xf32>
    %19 = arith.truncf %18 : vector<8x64xf32> to vector<8x64xbf16>
    %cst_12 = arith.constant dense<0.000000e+00> : vector<8x16xf32>
    %20 = tpu.matmul %19, %4, %cst_12 {dimension_numbers = #tpu.dot_dimension_numbers<[1], [0], [0], [1], [0, 0, 1, 1], [], []>} : vector<8x64xbf16>, vector<64x16xbf16>, vector<8x16xf32> -> vector<8x16xf32>
    %21 = vector.broadcast %7 : vector<1x16xf32> to vector<8x16xf32>
    %22 = arith.addf %20, %21 : vector<8x16xf32>
    %cst_13 = arith.constant dense<0xFF800000> : vector<16xf32>
    %23 = vector.multi_reduction <maximumf>, %22, %cst_13 [0] : vector<8x16xf32> to vector<16xf32>
    %24 = vector.shape_cast %23 : vector<16xf32> to vector<1x16xf32>
    %25 = vector.broadcast %24 : vector<1x16xf32> to vector<8x16xf32>
    %26 = arith.subf %22, %25 : vector<8x16xf32>
    %27 = math.exp %26 : vector<8x16xf32>
    %cst_14 = arith.constant dense<0.000000e+00> : vector<16xf32>
    %28 = vector.multi_reduction <add>, %27, %cst_14 [0] : vector<8x16xf32> to vector<16xf32>
    %29 = vector.shape_cast %28 : vector<16xf32> to vector<1x16xf32>
    %30 = tpu.reciprocal %29 {approx = true} : vector<1x16xf32> -> vector<1x16xf32>
    %31 = vector.broadcast %30 : vector<1x16xf32> to vector<8x16xf32>
    %32 = arith.mulf %27, %31 : vector<8x16xf32>
    %c0_15 = arith.constant 0 : index
    %c0_16 = arith.constant 0 : index
    %33 = vector.load %arg3[%c0_15, %c0_16] : memref<8x16xf32, #tpu.memory_space<vmem>>, vector<8x16xf32>
    tpu.vector_store %arg3[%c0_15, %c0_16], %32 {strides = array<i32>} : memref<8x16xf32, #tpu.memory_space<vmem>>, vector<8x16xf32>,
    return
  }
}

</mosaic_0001>

<llo_original>
// kernel: tpu_custom_call.1
$region0: #{tpu_custom_call.1}
  #allocation0 [shape = 'u32[]', space=smem, size = 0x4, offset = 0x4, fixed_abs, tag = 'smem constant byte address 0x4 - core index']
  #allocation1 [shape = 'u32[72,128]{1,0:T(1,128)}', space=vmem, size = 0x9000, scoped, tag = 'internal scratch']
  %s0 = inlined_call_operand.vmem [shape: f32[8,64], index: 0, kind: input, shape index: {}]
  %s1 = inlined_call_operand.vmem [shape: bf16[192,64], index: 1, kind: input, shape index: {}]
  %s2 = inlined_call_operand.vmem [shape: f32[3,64], index: 2, kind: input, shape index: {}]
  %s3 = inlined_call_operand.hbm [shape: f32[8,16], index: 3, kind: output, shape index: {}]
  %s4 = sld [smem:[#allocation0]]
  $region22: #{tpu_custom_call.1} parent=0
    _
  %s6 = ssub.s32 1, %s4
  %s7 = scalar_select 0, %s6, %s4
  $region1: #{tpu_custom_call.1} parent=0
    #allocation2 [shape = 'u8[4096]{0}', space=vmem, size = 0x1000, scoped, tag = 'output window, operand 0, single buffered']
    #allocation3 [shape = 's32[1]{0}', space=sflag, size = 0x4, scoped, tag = 'scoped memory for tpu_custom_call.1']
    %8 = vsyncpa [#allocation3], 0
    // Predicated region
    $region2: #{tpu_custom_call.1} parent=1 // pred_check
      _
    $region3: #{tpu_custom_call.1} parent=1 // pred_check_branch
      %10 = sbr.rel (0) target = $region5
    $region4: #{tpu_custom_call.1} parent=1 // pred_region
      _
    $region5: #{tpu_custom_call.1} parent=1 // pred_fallthru
      _
    // Predicated region
    $region6: #{tpu_custom_call.1} parent=1 // pred_check
      _
    $region7: #{tpu_custom_call.1} parent=1 // pred_check_branch
      %12 = sbr.rel (0) target = $region9
    $region8: #{tpu_custom_call.1} parent=1 // pred_region
      _
    $region9: #{tpu_custom_call.1} parent=1 // pred_fallthru
      _
    // Predicated region
    $region10: #{tpu_custom_call.1} parent=1 // pred_check
      _
    $region11: #{tpu_custom_call.1} parent=1 // pred_check_branch
      %14 = sbr.rel (0) target = $region13
    $region12: #{tpu_custom_call.1} parent=1 // pred_region
      _
    $region13: #{tpu_custom_call.1} parent=1 // pred_fallthru
      _
    %v16 = vld [vmem:[%s0] sm:$0xff]
    %v17 = vpack.c.bf16 %v16, %v16
    %v18 = vld [vmem:[%s1] sm:$0xf]
    %v19 = vld [vmem:[%s1 + $0x4] sm:$0xf]
    %v20 = vld [vmem:[%s1 + $0x8] sm:$0xf]
    %v21 = vld [vmem:[%s1 + $0xc] sm:$0xf]
    %v22 = vld [vmem:[%s1 + $0x10] sm:$0xf]
    %v23 = vld [vmem:[%s1 + $0x14] sm:$0xf]
    %v24 = vld [vmem:[%s1 + $0x18] sm:$0xf]
    %v25 = vld [vmem:[%s1 + $0x1c] sm:$0xf]
    %v26 = vld [vmem:[%s1 + $0x20] sm:$0xf]
    %v27 = vld [vmem:[%s1 + $0x24] sm:$0xf]
    %v28 = vld [vmem:[%s1 + $0x28] sm:$0xf]
    %v29 = vld [vmem:[%s1 + $0x2c] sm:$0xf]
    %v30 = vld [vmem:[%s1 + $0x30] sm:$0xf]
    %v31 = vld [vmem:[%s1 + $0x34] sm:$0xf]
    %v32 = vld [vmem:[%s1 + $0x38] sm:$0xf]
    %v33 = vld [vmem:[%s1 + $0x3c] sm:$0xf]
    %v34 = vld [vmem:[%s1 + $0x40] sm:$0xf]
    %v35 = vld [vmem:[%s1 + $0x44] sm:$0xf]
    %v36 = vld [vmem:[%s1 + $0x48] sm:$0xf]
    %v37 = vld [vmem:[%s1 + $0x4c] sm:$0xf]
    %v38 = vld [vmem:[%s1 + $0x50] sm:$0xf]
    %v39 = vld [vmem:[%s1 + $0x54] sm:$0xf]
    %v40 = vld [vmem:[%s1 + $0x58] sm:$0xf]
    %v41 = vld [vmem:[%s1 + $0x5c] sm:$0xf]
    %v42 = vld [vmem:[%s2] sm:$0x1]
    %v43 = vld [vmem:[%s2 + $0x1] sm:$0x1]
    %v44 = vld [vmem:[%s2 + $0x2] sm:$0x1]
    %v45 = vperm.slane %v42, 0
    %v54 = vunpack.c.l.b16 %v18
    %v55 = vunpack.c.l.b16 %v19
    %v56 = vunpack.c.l.b16 %v20
    %v57 = vunpack.c.l.b16 %v21
    %v58 = vunpack.c.l.b16 %v22
    %v59 = vunpack.c.l.b16 %v23
    %v60 = vunpack.c.l.b16 %v24
    %v61 = vunpack.c.l.b16 %v25
    %v62 = vpack.c.b16 %v55, %v54
    %v63 = vpack.c.b16 %v57, %v56
    %v64 = vpack.c.b16 %v59, %v58
    %v65 = vpack.c.b16 %v61, %v60
    %vm70 = vcmask 523264
    %v72 = vsel %vm70, %v17, 0
    %74 = vmatpush.bf16.msra.mxu0 0
    %75 = vmatpush.bf16.msra.mxu0 0
    %76 = vmatpush.bf16.msra.mxu0 0
    %77 = vmatpush.bf16.msra.mxu0 0
    %78 = vmatpush.bf16.msra.mxu0 %v65
    %79 = vmatpush.bf16.msra.mxu0 %v64
    %80 = vmatpush.bf16.msra.mxu0 %v63
    %81 = vmatpush.bf16.msra.mxu0 %v62
    %82 = vmatmul.bf16.gmra.mxu0 %v72
    %v83 = vpop.f32.mrf.mxu0
    %v84 = vadd.f32 %v45, %v83
    %v85 = vpop.f32.mrf.mxu0
    %86 = vdwg.mxu0
    %v87 = vmax.f32 %v84, 0.0
    %v88 = vpack.c.bf16 %v87, %v87
    %v89 = vperm.slane %v43, 0
    %v98 = vunpack.c.l.b16 %v26
    %v99 = vunpack.c.l.b16 %v27
    %v100 = vunpack.c.l.b16 %v28
    %v101 = vunpack.c.l.b16 %v29
    %v102 = vunpack.c.l.b16 %v30
    %v103 = vunpack.c.l.b16 %v31
    %v104 = vunpack.c.l.b16 %v32
    %v105 = vunpack.c.l.b16 %v33
    %v106 = vpack.c.b16 %v99, %v98
    %v107 = vpack.c.b16 %v101, %v100
    %v108 = vpack.c.b16 %v103, %v102
    %v109 = vpack.c.b16 %v105, %v104
    %v115 = vsel %vm70, %v88, 0
    %117 = vmatpush.bf16.msra.mxu0 0
    %118 = vmatpush.bf16.msra.mxu0 0
    %119 = vmatpush.bf16.msra.mxu0 0
    %120 = vmatpush.bf16.msra.mxu0 0
    %121 = vmatpush.bf16.msra.mxu0 %v109
    %122 = vmatpush.bf16.msra.mxu0 %v108
    %123 = vmatpush.bf16.msra.mxu0 %v107
    %124 = vmatpush.bf16.msra.mxu0 %v106
    %125 = vmatmul.bf16.gmra.mxu0 %v115
    %v126 = vpop.f32.mrf.mxu0
    %v127 = vadd.f32 %v89, %v126
    %v128 = vpop.f32.mrf.mxu0
    %129 = vdwg.mxu0
    %v130 = vmax.f32 %v127, 0.0
    %v131 = vpack.c.bf16 %v130, %v130
    %v132 = vperm.slane %v44, 0
    %v141 = vunpack.c.l.b16 %v34
    %v142 = vunpack.c.l.b16 %v35
    %v143 = vunpack.c.l.b16 %v36
    %v144 = vunpack.c.l.b16 %v37
    %v145 = vunpack.c.l.b16 %v38
    %v146 = vunpack.c.l.b16 %v39
    %v147 = vunpack.c.l.b16 %v40
    %v148 = vunpack.c.l.b16 %v41
    %v149 = vpack.c.b16 %v142, %v141
    %v150 = vpack.c.b16 %v144, %v143
    %v151 = vpack.c.b16 %v146, %v145
    %v152 = vpack.c.b16 %v148, %v147
    %v158 = vsel %vm70, %v131, 0
    %160 = vmatpush.bf16.msra.mxu0 0
    %161 = vmatpush.bf16.msra.mxu0 0
    %162 = vmatpush.bf16.msra.mxu0 0
    %163 = vmatpush.bf16.msra.mxu0 0
    %164 = vmatpush.bf16.msra.mxu0 %v152
    %165 = vmatpush.bf16.msra.mxu0 %v151
    %166 = vmatpush.bf16.msra.mxu0 %v150
    %167 = vmatpush.bf16.msra.mxu0 %v149
    %168 = vmatmul.bf16.gmra.mxu0 %v158
    %v169 = vpop.f32.mrf.mxu0
    %v170 = vadd.f32 %v132, %v169
    %v171 = vpop.f32.mrf.mxu0
    %172 = vdwg.mxu0
    %vm173 = vcmask 130048
    %v174 = vsel %vm173, %v170, -inf
    %v175 = vrot.slane %v174, 4
    %v176 = vmax.f32 %v174, %v175
    %v177 = vrot.slane %v176, 2
    %v178 = vmax.f32 %v176, %v177
    %v179 = vrot.slane %v178, 1
    %v180 = vmax.f32 %v178, %v179
    %v181 = vsub.f32 %v170, %v180
    %v182 = vmul.f32 %v181, 1.442695
    %v183 = vpow.pop %v182
    %v184 = vsel %vm173, %v183, 0.0
    %v185 = vrot.slane %v184, 4
    %v186 = vadd.f32 %v184, %v185
    %v187 = vrot.slane %v186, 2
    %v188 = vadd.f32 %v186, %v187
    %v189 = vrot.slane %v188, 1
    %v190 = vadd.f32 %v188, %v189
    %v191 = vrcp.pop %v190
    %v192 = vmul.f32 %v183, %v191
    %193 = vst.msk [vmem:[#allocation2] sm:$0xff] %vm173, %v192
    // Predicated region
    $region14: #{tpu_custom_call.1} parent=1 // pred_check
      _
    $region15: #{tpu_custom_call.1} parent=1 // pred_check_branch
      %195 = sbr.rel (0) target = $region17
    $region16: #{tpu_custom_call.1} parent=1 // pred_region
      %197 = vsyncadd [#allocation3], 0
      %s199 = sshll.u32 [#allocation2], 4
      %s200 = int_to_ptr.vmem [resolvable:$true] %s199
      %s201 = sshll.u32 %s3, 4
      %s202 = int_to_ptr.hbm [resolvable:$true] %s201
      %204 = dma.vmem_to_hbm [thread:$0]  %s200, 128, %s202, [#allocation3]
    $region17: #{tpu_custom_call.1} parent=1 // pred_fallthru
      _
    // Predicated region
    $region18: #{tpu_custom_call.1} parent=1 // pred_check
      _
    $region19: #{tpu_custom_call.1} parent=1 // pred_check_branch
      %206 = sbr.rel (0) target = $region21
    $region20: #{tpu_custom_call.1} parent=1 // pred_region
      %208 = dma.done [#allocation3], 128
    $region21: #{tpu_custom_call.1} parent=1 // pred_fallthru
      _
    %209 = vsyncpa [#allocation3], 1

</llo_original>
